<compile_context>
chip_gen: v6e
topology: v6e:2x2x1
jax: 0.10.0
libtpu: 0.0.40
codegen_flags: <defaults>
</compile_context>

<pallas_src>
import math
from functools import partial

import jax
import jax.numpy as jnp
from jax.experimental import pallas as pl
from jax.experimental.pallas import tpu as pltpu


def _sepsattn_kernel(x_ref, w_ref, o_ref, *, bb, d_model, n_valid, n_pad):
    d = d_model

    def body(i, carry):
        x = x_ref[i]  # (C, n_pad)

        # Fused 1x1 conv: one MXU matmul, f32 accumulation.
        qkv = jnp.dot(
            w_ref[...], x,
            preferred_element_type=jnp.float32,
            precision=jax.lax.Precision.HIGHEST,
        )  # (2D+8, n_pad)

        k = qkv[0:d, :]              # (D, n_pad)
        v = qkv[d:2 * d, :]          # (D, n_pad)
        q = qkv[2 * d:2 * d + 1, :]  # (1, n_pad)

        if n_valid != n_pad:
            col = jax.lax.broadcasted_iota(jnp.int32, (1, n_pad), 1)
            q = jnp.where(col < n_valid, q, jnp.finfo(jnp.float32).min)

        # Numerically-stable softmax numerator; normalisation folded into c_vec.
        m = jnp.max(q, axis=-1, keepdims=True)
        e = jnp.exp(q - m)                                    # (1, n_pad)
        if n_valid != n_pad:
            e = jnp.where(col < n_valid, e, 0.0)

        denom = jnp.sum(e, axis=-1, keepdims=True)            # (1, 1)
        c_unnorm = jnp.sum(k * e, axis=-1, keepdims=True)     # (D, 1)
        c_vec = c_unnorm * pl.reciprocal(denom, approx=True)  # (D, 1)

        out = jnp.maximum(v, 0.0) * c_vec                     # (D, n_pad)
        o_ref[i] = out.astype(o_ref.dtype)
        return carry

    jax.lax.fori_loop(0, bb, body, 0, unroll=True)


def sep_s_attn(x, w_qkv, d_model):
    """Forward pass of SepSAttn.

    x:      (B, C, H, W)
    w_qkv:  (1 + 2*d_model, C)   -- Conv2d(1x1, bias=False) weight, squeezed.
    returns (B, d_model, H, W)
    """
    b, c, h, w = x.shape
    assert w_qkv.shape == (1 + 2 * d_model, c)

    n = h * w
    n_pad = ((n + 127) // 128) * 128  # lane-dense spatial axis

    x_flat = x.reshape(b, c, n)
    if n_pad != n:
        x_flat = jnp.pad(x_flat, ((0, 0), (0, 0), (0, n_pad - n)))

    # Fused, 8-sublane-aligned projection weight:
    # rows [0:D] = k-proj, [D:2D] = v-proj, [2D] = q-proj, [2D+1:2D+8] = zeros.
    wq = w_qkv[0:1, :]
    wk = w_qkv[1:1 + d_model, :]
    wv = w_qkv[1 + d_model:1 + 2 * d_model, :]
    w_fused = jnp.concatenate(
        [wk, wv, wq, jnp.zeros((7, c), dtype=w_qkv.dtype)], axis=0
    )  # (2*d_model + 8, C)

    # Batch blocking: target ~1 MiB output blocks (HBM-writeback-bound op),
    # keep >= 2 grid steps when B >= 2 (v7x megacore), make BB divide B.
    per_batch_out_bytes = d_model * n_pad * 4
    bb = max(1, (1 << 20) // per_batch_out_bytes)
    bb = min(bb, b)
    if b >= 2:
        bb = min(bb, (b + 1) // 2)
    while b % bb != 0:
        bb -= 1
    grid = (b // bb,)

    kernel = partial(_sepsattn_kernel, bb=bb, d_model=d_model,
                     n_valid=n, n_pad=n_pad)

    flops = 2 * b * (2 * d_model + 8) * c * n_pad + 6 * b * d_model * n_pad
    bytes_accessed = 4 * (x_flat.size + w_fused.size + b * d_model * n_pad)

    out = pl.pallas_call(
        kernel,
        out_shape=jax.ShapeDtypeStruct((b, d_model, n_pad), x.dtype),
        grid_spec=pltpu.PrefetchScalarGridSpec(
            num_scalar_prefetch=0,
            grid=grid,
            in_specs=[
                pl.BlockSpec((bb, c, n_pad), lambda i: (i, 0, 0)),     # x block
                pl.BlockSpec((2 * d_model + 8, c), lambda i: (0, 0)),  # fused W (resident)
            ],
            out_specs=pl.BlockSpec((bb, d_model, n_pad), lambda i: (i, 0, 0)),
        ),
        compiler_params=pltpu.CompilerParams(
            dimension_semantics=("parallel",),
        ),
        cost_estimate=pl.CostEstimate(
            flops=flops,
            transcendentals=b * n_pad,
            bytes_accessed=bytes_accessed,
        ),
    )(x_flat, w_fused)

    if n_pad != n:
        out = out[:, :, :n]
    return out.reshape(b, d_model, h, w)


def sep_s_attn_ref(x, w_qkv, d_model):
    """Pure-JAX reference (mirrors the PyTorch forward)."""
    b, c, h, w = x.shape
    n = h * w
    xf = x.reshape(b, c, n)
    qkv = jnp.einsum("oc,bcn->bon", w_qkv, xf,
                     precision=jax.lax.Precision.HIGHEST)
    q = qkv[:, 0:1, :]
    k = qkv[:, 1:1 + d_model, :]
    v = qkv[:, 1 + d_model:, :]
    s = jax.nn.softmax(q, axis=-1)
    c_vec = jnp.sum(k * s, axis=-1, keepdims=True)
    out = jax.nn.relu(v) * c_vec
    return out.reshape(b, d_model, h, w)


if __name__ == "__main__":
    key = jax.random.PRNGKey(0)
    kx, kw = jax.random.split(key)

    # Small shapes consistent with the module: batch=2, channels=4, spatial=16x16,
    # d_model=32  ->  qkv weight has 1 + 2*32 = 65 output channels.
    B, C, H, W = 2, 4, 16, 16
    D_MODEL = 32

    x = jax.random.normal(kx, (B, C, H, W), dtype=jnp.float32)
    w_qkv = jax.random.normal(kw, (1 + 2 * D_MODEL, C), dtype=jnp.float32)
    w_qkv = w_qkv * (1.0 / math.sqrt(C))  # conv-style scaling

    out = sep_s_attn(x, w_qkv, D_MODEL)
    out = jax.block_until_ready(out)

    ref = sep_s_attn_ref(x, w_qkv, D_MODEL)
    assert out.shape == (B, D_MODEL, H, W)
    assert out.dtype == x.dtype
    max_err = float(jnp.max(jnp.abs(out - ref)))
    assert jnp.allclose(out, ref, atol=2e-2, rtol=2e-2), f"max_abs_err={max_err}"

    print("KERNEL_OK")
</pallas_src>

<mosaic_0001>
module attributes {stable_mosaic.version = 11 : i64} {
  func.func @_sepsattn_kernel(%arg0: i32, %arg1: memref<1x4x256xf32, #tpu.memory_space<vmem>>, %arg2: memref<72x4xf32, #tpu.memory_space<vmem>>, %arg3: memref<1x32x256xf32, #tpu.memory_space<vmem>>) attributes {dimension_semantics = [#tpu.dimension_semantics<parallel>], iteration_bounds = array<i64: 2>, scalar_prefetch = 0 : i64, scratch_operands = 0 : i64, tpu.core_type = #tpu.core_type<tc>, window_params = [{transform_indices = @transform_0, window_bounds = array<i64: 1, 4, 256>}, {pipeline_mode = #tpu.pipeline_mode<synchronous>, transform_indices = @transform_1, window_bounds = array<i64: 72, 4>}, {transform_indices = @transform_2, window_bounds = array<i64: 1, 32, 256>}]} {
    %c0_i32 = arith.constant 0 : i32
    %0 = arith.index_cast %c0_i32 : i32 to index
    %c0 = arith.constant 0 : index
    %c0_0 = arith.constant 0 : index
    %1 = vector.load %arg1[%0, %c0, %c0_0] : memref<1x4x256xf32, #tpu.memory_space<vmem>>, vector<1x4x256xf32>
    %2 = vector.shape_cast %1 : vector<1x4x256xf32> to vector<4x256xf32>
    %c0_1 = arith.constant 0 : index
    %c0_2 = arith.constant 0 : index
    %3 = vector.load %arg2[%c0_1, %c0_2] : memref<72x4xf32, #tpu.memory_space<vmem>>, vector<72x4xf32>
    %cst = arith.constant dense<0.000000e+00> : vector<72x256xf32>
    %4 = tpu.matmul %3, %2, %cst {dimension_numbers = #tpu.dot_dimension_numbers<[1], [0], [0], [1], [0, 0, 1, 1], [], []>, precision = #tpu.contract_precision<fp32>} : vector<72x4xf32>, vector<4x256xf32>, vector<72x256xf32> -> vector<72x256xf32>
    %5 = vector.extract_strided_slice %4 {offsets = [0, 0], sizes = [32, 256], strides = [1, 1]} : vector<72x256xf32> to vector<32x256xf32>
    %6 = vector.extract_strided_slice %4 {offsets = [32, 0], sizes = [32, 256], strides = [1, 1]} : vector<72x256xf32> to vector<32x256xf32>
    %7 = vector.extract_strided_slice %4 {offsets = [64, 0], sizes = [1, 256], strides = [1, 1]} : vector<72x256xf32> to vector<1x256xf32>
    %cst_3 = arith.constant dense<0xFF800000> : vector<1xf32>
    %8 = vector.multi_reduction <maximumf>, %7, %cst_3 [1] : vector<1x256xf32> to vector<1xf32>
    %9 = vector.shape_cast %8 : vector<1xf32> to vector<1x1xf32>
    %10 = vector.broadcast %9 : vector<1x1xf32> to vector<1x256xf32>
    %11 = arith.subf %7, %10 : vector<1x256xf32>
    %12 = math.exp %11 : vector<1x256xf32>
    %cst_4 = arith.constant dense<0.000000e+00> : vector<1xf32>
    %13 = vector.multi_reduction <add>, %12, %cst_4 [1] : vector<1x256xf32> to vector<1xf32>
    %14 = vector.shape_cast %13 : vector<1xf32> to vector<1x1xf32>
    %15 = vector.broadcast %12 : vector<1x256xf32> to vector<32x256xf32>
    %16 = arith.mulf %5, %15 : vector<32x256xf32>
    %cst_5 = arith.constant dense<0.000000e+00> : vector<32xf32>
    %17 = vector.multi_reduction <add>, %16, %cst_5 [1] : vector<32x256xf32> to vector<32xf32>
    %18 = vector.shape_cast %17 : vector<32xf32> to vector<32x1xf32>
    %19 = tpu.reciprocal %14 {approx = true} : vector<1x1xf32> -> vector<1x1xf32>
    %20 = vector.broadcast %19 : vector<1x1xf32> to vector<32x1xf32>
    %21 = arith.mulf %18, %20 : vector<32x1xf32>
    %cst_6 = arith.constant 0.000000e+00 : f32
    %22 = vector.broadcast %cst_6 : f32 to vector<32x256xf32>
    %23 = arith.maximumf %6, %22 : vector<32x256xf32>
    %24 = vector.broadcast %21 : vector<32x1xf32> to vector<32x256xf32>
    %25 = arith.mulf %23, %24 : vector<32x256xf32>
    %26 = arith.index_cast %c0_i32 : i32 to index
    %c0_7 = arith.constant 0 : index
    %c0_8 = arith.constant 0 : index
    %27 = vector.load %arg3[%26, %c0_7, %c0_8] : memref<1x32x256xf32, #tpu.memory_space<vmem>>, vector<1x32x256xf32>
    %28 = vector.shape_cast %27 : vector<1x32x256xf32> to vector<32x256xf32>
    %29 = vector.shape_cast %25 : vector<32x256xf32> to vector<1x32x256xf32>
    tpu.vector_store %arg3[%26, %c0_7, %c0_8], %29 {strides = array<i32>} : memref<1x32x256xf32, #tpu.memory_space<vmem>>, vector<1x32x256xf32>,
    %c1_i32 = arith.constant 1 : i32
    return
  }
  func.func @transform_0(%arg0: i32) -> (i32, i32, i32) {
    %c0_i32 = arith.constant 0 : i32
    %c0_i32_0 = arith.constant 0 : i32
    %c0_i32_1 = arith.constant 0 : i32
    return %arg0, %c0_i32, %c0_i32_0 : i32, i32, i32
  }
  func.func @transform_1(%arg0: i32) -> (i32, i32) {
    %c0_i32 = arith.constant 0 : i32
    %c0_i32_0 = arith.constant 0 : i32
    %c0_i32_1 = arith.constant 0 : i32
    return %c0_i32, %c0_i32_0 : i32, i32
  }
  func.func @transform_2(%arg0: i32) -> (i32, i32, i32) {
    %c0_i32 = arith.constant 0 : i32
    %c0_i32_0 = arith.constant 0 : i32
    %c0_i32_1 = arith.constant 0 : i32
    return %arg0, %c0_i32, %c0_i32_0 : i32, i32, i32
  }
}

</mosaic_0001>

<llo_original>
// kernel: tpu_custom_call.1
$region0: #{tpu_custom_call.1}
  #allocation0 [shape = 'u32[]', space=smem, size = 0x4, offset = 0x4, fixed_abs, tag = 'smem constant byte address 0x4 - core index']
  #allocation1 [shape = 'u32[144,128]{1,0:T(1,128)}', space=vmem, size = 0x12000, scoped, tag = 'internal scratch']
  %s0 = inlined_call_operand.vmem [shape: f32[2,4,256], index: 0, kind: input, shape index: {}]
  %s1 = inlined_call_operand.vmem [shape: f32[72,4], index: 1, kind: input, shape index: {}]
  %s2 = inlined_call_operand.hbm [shape: f32[2,32,256], index: 2, kind: output, shape index: {}]
  %s3 = sld [smem:[#allocation0]]
  $region41: #{tpu_custom_call.1} parent=0
    _
  %s5 = ssub.s32 1, %s3
  %s6 = scalar_select 0, %s5, %s3
  $region1: #{tpu_custom_call.1} parent=0
    #allocation2 [shape = 'u8[65536]{0}', space=vmem, size = 0x10000, scoped, tag = 'output window, operand 0']
    #allocation3 [shape = 's32[2]{0}', space=sflag, size = 0x8, scoped, tag = 'scoped memory for tpu_custom_call.1']
    %7 = vsyncpa [#allocation3], 0
    %s8 = scalar_lea.sflag [#allocation3], 1
    %9 = vsyncpa %s8, 0
    loop: start=0, step=1, limit=4
    $region2: #{tpu_custom_call.1} parent=1 // loop_pre_header
      _
    $region3: #{tpu_custom_call.1} parent=1 // loop_header
      %s11 = sphi 0, %s15
      %p12 = scmp.ge.s32.totalorder %s11, 4
      %s21 = sphi 0, %s23
      %s24 = sphi 0, %s21
      %s25 = sphi 0, %s24
      %s41 = sphi 0, %s25
      %s45 = sphi 0, %s45
      %s47 = sphi 0, %s45
      %s48 = sphi 0, %s47
      %s62 = sphi 0, %s48
      %s68 = sphi 0, %s70
      %s71 = sphi 0, %s68
      %s72 = sphi 0, %s71
      %s88 = sphi 0, %s72
    $region4: #{tpu_custom_call.1} parent=1 // loop_header_branch
      %14 = sbr.rel (%p12) target = $region8
    $region5: #{tpu_custom_call.1} parent=1 // loop_body
      %s16 = ssub.s32 %s11, 1
      %s17 = ssub.s32 %s11, 2
      %s18 = sadd.s32 %s11, 1
      %s19 = ssub.s32 %s11, %s18
      %p20 = scmp.eq.s32.totalorder %s19, 0
      %s22 = sadd.s32 %s21, 1
      %s23 = scalar_select %p20, %s21, %s22
      %p26 = pneg %p20
      %p27 = scmp.eq.s32.totalorder %s11, 1
      %p28 = por %p26, %p27
      %p29 = scmp.ne.s32.totalorder %s21, %s24
      %p30 = scmp.eq.s32.totalorder %s11, 0
      %p31 = por %p29, %p30
      %p32 = scmp.ne.s32.totalorder %s21, %s24
      %p33 = scmp.eq.s32.totalorder %s16, 1
      %p34 = por %p32, %p33
      %p35 = scmp.ne.s32.totalorder %s24, %s25
      %p36 = scmp.eq.s32.totalorder %s16, 0
      %p37 = por %p35, %p36
      %p38 = scmp.ne.s32.totalorder %s24, %s25
      %p39 = scmp.eq.s32.totalorder %s17, 1
      %p40 = por %p38, %p39
      %p42 = scmp.ne.s32.totalorder %s25, %s41
      %p43 = scmp.eq.s32.totalorder %s17, 0
      %p44 = por %p42, %p43
      %s46 = sadd.s32 %s45, 1
      %p49 = scmp.eq.s32.totalorder %s11, 1
      %p50 = scmp.ne.s32.totalorder %s45, %s47
      %p51 = scmp.eq.s32.totalorder %s11, 0
      %p52 = por %p50, %p51
      %p53 = scmp.ne.s32.totalorder %s45, %s47
      %p54 = scmp.eq.s32.totalorder %s16, 1
      %p55 = por %p53, %p54
      %p56 = scmp.ne.s32.totalorder %s47, %s48
      %p57 = scmp.eq.s32.totalorder %s16, 0
      %p58 = por %p56, %p57
      %p59 = scmp.ne.s32.totalorder %s47, %s48
      %p60 = scmp.eq.s32.totalorder %s17, 1
      %p61 = por %p59, %p60
      %p63 = scmp.ne.s32.totalorder %s48, %s62
      %p64 = scmp.eq.s32.totalorder %s17, 0
      %p65 = por %p63, %p64
      %s66 = ssub.s32 %s11, %s18
      %p67 = scmp.eq.s32.totalorder %s66, 0
      %s69 = sadd.s32 %s68, 1
      %s70 = scalar_select %p67, %s68, %s69
      %p73 = pneg %p67
      %p74 = scmp.eq.s32.totalorder %s11, 1
      %p75 = por %p73, %p74
      %p76 = scmp.ne.s32.totalorder %s68, %s71
      %p77 = scmp.eq.s32.totalorder %s11, 0
      %p78 = por %p76, %p77
      %p79 = scmp.ne.s32.totalorder %s68, %s71
      %p80 = scmp.eq.s32.totalorder %s16, 1
      %p81 = por %p79, %p80
      %p82 = scmp.ne.s32.totalorder %s71, %s72
      %p83 = scmp.eq.s32.totalorder %s16, 0
      %p84 = por %p82, %p83
      %p85 = scmp.ne.s32.totalorder %s71, %s72
      %p86 = scmp.eq.s32.totalorder %s17, 1
      %p87 = por %p85, %p86
      %p89 = scmp.ne.s32.totalorder %s72, %s88
      %p90 = scmp.eq.s32.totalorder %s17, 0
      %p91 = por %p89, %p90
      %p92 = scmp.le.s32.totalorder 1, %s11
      %p93 = scmp.lt.s32.totalorder %s11, 3
      %p94 = pnand %p92, %p93
      %p95 = pneg %p94
      // Predicated region
      $region9: #{tpu_custom_call.1} parent=5 // pred_check
        _
      $region10: #{tpu_custom_call.1} parent=5 // pred_check_branch
        %97 = sbr.rel (%p94) target = $region12
      $region11: #{tpu_custom_call.1} parent=5 // pred_region
        %s98 = ssub.s32 %s11, 1
        // Predicated region
        $region13: #{tpu_custom_call.1} parent=11 // pred_check
          %p99 = pneg %p58
        $region14: #{tpu_custom_call.1} parent=11 // pred_check_branch
          %101 = sbr.rel (%p99) target = $region16
        $region15: #{tpu_custom_call.1} parent=11 // pred_region
          _
        $region16: #{tpu_custom_call.1} parent=11 // pred_fallthru
          _
      $region12: #{tpu_custom_call.1} parent=5 // pred_fallthru
        _
      %p102 = scmp.lt.s32.totalorder %s11, 2
      // Predicated region
      $region17: #{tpu_custom_call.1} parent=5 // pred_check
        %p103 = pneg %p102
      $region18: #{tpu_custom_call.1} parent=5 // pred_check_branch
        %105 = sbr.rel (%p103) target = $region20
      $region19: #{tpu_custom_call.1} parent=5 // pred_region
        // Predicated region
        $region21: #{tpu_custom_call.1} parent=19 // pred_check
          %p106 = pneg %p31
        $region22: #{tpu_custom_call.1} parent=19 // pred_check_branch
          %108 = sbr.rel (%p106) target = $region24
        $region23: #{tpu_custom_call.1} parent=19 // pred_region
          %p109 = scmp.lt.s32.totalorder %s11, 1
          %s110 = scalar_select %p109, %s11, 1
          %s111 = smul.addr %s110, 2
          %s112 = smul.addr %s111, 4
          %s113 = scalar_lea.vmem %s0, %s112
        $region24: #{tpu_custom_call.1} parent=19 // pred_fallthru
          _
      $region20: #{tpu_custom_call.1} parent=5 // pred_fallthru
        _
      %p114 = scmp.le.s32.totalorder 1, %s11
      %p115 = scmp.lt.s32.totalorder %s11, 3
      %p116 = pnand %p114, %p115
      %p117 = pneg %p116
      // Predicated region
      $region25: #{tpu_custom_call.1} parent=5 // pred_check
        _
      $region26: #{tpu_custom_call.1} parent=5 // pred_check_branch
        %119 = sbr.rel (%p116) target = $region28
      $region27: #{tpu_custom_call.1} parent=5 // pred_region
        %s120 = ssub.s32 %s11, 1
        %p121 = scmp.lt.s32.totalorder %s16, 1
        %s122 = scalar_select %p121, %s16, 1
        %s123 = smul.addr %s122, 2
        %s124 = smul.addr %s123, 4
        %s125 = scalar_lea.vmem %s0, %s124
        %p126 = pneg %p37
        %p127 = pneg %p34
        %p128 = pneg %p58
        %p129 = pneg %p55
        %p130 = pneg %p84
        %p131 = pneg %p81
        %s132 = sand.u32 %s71, 1
        %s133 = scalar_lea.sflag [#allocation3], %s132
        %s134 = sand.u32 %s71, 1
        %s135 = smul.addr %s134, 64
        %s136 = scalar_lea.vmem [#allocation2], %s135
        %p137 = scmp.lt.s32.totalorder %s16, 1
        %s138 = scalar_select %p137, %s16, 1
        %s139 = smul.addr %s138, 2
        %s140 = smul.addr %s139, 4
        %s141 = scalar_lea.vmem %s0, %s140
        %v142 = vld [vmem:[%s141] sm:$0xff]
        %v143 = vld [vmem:[%s1] sm:$0xff]
        %v144 = vld [vmem:[%s1 + $0x8] sm:$0xff]
        %v145 = vld [vmem:[%s1 + $0x10] sm:$0xff]
        %v146 = vld [vmem:[%s1 + $0x18] sm:$0xff]
        %v147 = vld [vmem:[%s1 + $0x20] sm:$0xff]
        %v148 = vld [vmem:[%s1 + $0x28] sm:$0xff]
        %v149 = vld [vmem:[%s1 + $0x30] sm:$0xff]
        %v150 = vld [vmem:[%s1 + $0x38] sm:$0xff]
        %v151 = vld [vmem:[%s1 + $0x40] sm:$0xff]
        %v153 = vcombine.high %v142, %v142
        %vm154 = vcmask 31744
        %v156 = vsel %vm154, %v143, 0
        %v159 = vsel %vm154, %v144, 0
        %v162 = vsel %vm154, %v145, 0
        %v165 = vsel %vm154, %v146, 0
        %v168 = vsel %vm154, %v147, 0
        %v171 = vsel %vm154, %v148, 0
        %v174 = vsel %vm154, %v149, 0
        %v177 = vsel %vm154, %v150, 0
        %v180 = vsel %vm154, %v151, 0
        %vm182 = vcmask 1043456
        %v183 = vsel %vm182, %v142, 0
        %v185 = vsel %vm182, %v153, 0
        %187 = vmatprep.subr.mxu0 0.0
        %188 = vmatpush1.msra.mxu0 0.0
        %189 = vmatprep.subr.mxu0 0.0
        %190 = vmatpush1.msra.mxu0 0.0
        %191 = vmatprep.subr.mxu0 0.0
        %192 = vmatpush1.msra.mxu0 0.0
        %193 = vmatprep.subr.mxu0 0.0
        %194 = vmatpush1.msra.mxu0 0.0
        %195 = vmatprep.subr.mxu0 0.0
        %196 = vmatpush1.msra.mxu0 0.0
        %197 = vmatprep.subr.mxu0 0.0
        %198 = vmatpush1.msra.mxu0 0.0
        %199 = vmatprep.subr.mxu0 0.0
        %200 = vmatpush1.msra.mxu0 0.0
        %201 = vmatprep.subr.mxu0 0.0
        %202 = vmatpush1.msra.mxu0 0.0
        %203 = vmatprep.subr.mxu0 0.0
        %204 = vmatpush1.msra.mxu0 0.0
        %205 = vmatprep.subr.mxu0 0.0
        %206 = vmatpush1.msra.mxu0 0.0
        %207 = vmatprep.subr.mxu0 0.0
        %208 = vmatpush1.msra.mxu0 0.0
        %209 = vmatprep.subr.mxu0 0.0
        %210 = vmatpush1.msra.mxu0 0.0
        %211 = vmatprep.subr.mxu0 0.0
        %212 = vmatpush1.msra.mxu0 0.0
        %213 = vmatprep.subr.mxu0 0.0
        %214 = vmatpush1.msra.mxu0 0.0
        %215 = vmatprep.subr.mxu0 0.0
        %216 = vmatpush1.msra.mxu0 0.0
        %v217 = vand.u32 %v185, 4294901760
        %218 = vmatprep.subr.mxu0 %v217
        %v219 = vand.u32 %v183, 4294901760
        %220 = vmatpush1.msra.mxu0 %v219
        %221 = vmatprep.subr.mxu0 0.0
        %222 = vmatpush2.msra.mxu0 0.0
        %223 = vmatprep.subr.mxu0 0.0
        %224 = vmatpush2.msra.mxu0 0.0
        %225 = vmatprep.subr.mxu0 0.0
        %226 = vmatpush2.msra.mxu0 0.0
        %227 = vmatprep.subr.mxu0 0.0
        %228 = vmatpush2.msra.mxu0 0.0
        %229 = vmatprep.subr.mxu0 0.0
        %230 = vmatpush2.msra.mxu0 0.0
        %231 = vmatprep.subr.mxu0 0.0
        %232 = vmatpush2.msra.mxu0 0.0
        %233 = vmatprep.subr.mxu0 0.0
        %234 = vmatpush2.msra.mxu0 0.0
        %235 = vmatprep.subr.mxu0 0.0
        %236 = vmatpush2.msra.mxu0 0.0
        %237 = vmatprep.subr.mxu0 0.0
        %238 = vmatpush2.msra.mxu0 0.0
        %239 = vmatprep.subr.mxu0 0.0
        %240 = vmatpush2.msra.mxu0 0.0
        %241 = vmatprep.subr.mxu0 0.0
        %242 = vmatpush2.msra.mxu0 0.0
        %243 = vmatprep.subr.mxu0 0.0
        %244 = vmatpush2.msra.mxu0 0.0
        %245 = vmatprep.subr.mxu0 0.0
        %246 = vmatpush2.msra.mxu0 0.0
        %247 = vmatprep.subr.mxu0 0.0
        %248 = vmatpush2.msra.mxu0 0.0
        %249 = vmatprep.subr.mxu0 0.0
        %250 = vmatpush2.msra.mxu0 0.0
        %251 = vmatprep.subr.mxu0 0.0
        %252 = vmatpush2.msra.mxu0 0.0
        %253 = vmatprep.mubr.f32.mxu0 0.0
        %v254 = vand.u32 %v156, 4294901760
        %v255 = vsub.f32 %v156, %v254
        %v256 = vand.u32 %v255, 4294901760
        %v257 = vsub.f32 %v255, %v256
        %v258 = vand.u32 %v257, 4294901760
        %259 = vmatmul.mubr.f32.gmra.mxu0 %v258
        %v260 = vpop.f32.mrf.mxu0
        %v261 = vadd.f32 0.0, %v260
        %v262 = vpop.f32.mrf.mxu0
        %v263 = vadd.f32 0.0, %v262
        %264 = vmatprep.mubr.f32.mxu0 0.0
        %v265 = vand.u32 %v159, 4294901760
        %v266 = vsub.f32 %v159, %v265
        %v267 = vand.u32 %v266, 4294901760
        %v268 = vsub.f32 %v266, %v267
        %v269 = vand.u32 %v268, 4294901760
        %270 = vmatmul.mubr.f32.gmra.mxu0 %v269
        %v271 = vpop.f32.mrf.mxu0
        %v272 = vadd.f32 0.0, %v271
        %v273 = vpop.f32.mrf.mxu0
        %v274 = vadd.f32 0.0, %v273
        %275 = vmatprep.mubr.f32.mxu0 0.0
        %v276 = vand.u32 %v162, 4294901760
        %v277 = vsub.f32 %v162, %v276
        %v278 = vand.u32 %v277, 4294901760
        %v279 = vsub.f32 %v277, %v278
        %v280 = vand.u32 %v279, 4294901760
        %281 = vmatmul.mubr.f32.gmra.mxu0 %v280
        %v282 = vpop.f32.mrf.mxu0
        %v283 = vadd.f32 0.0, %v282
        %v284 = vpop.f32.mrf.mxu0
        %v285 = vadd.f32 0.0, %v284
        %286 = vmatprep.mubr.f32.mxu0 0.0
        %v287 = vand.u32 %v165, 4294901760
        %v288 = vsub.f32 %v165, %v287
        %v289 = vand.u32 %v288, 4294901760
        %v290 = vsub.f32 %v288, %v289
        %v291 = vand.u32 %v290, 4294901760
        %292 = vmatmul.mubr.f32.gmra.mxu0 %v291
        %v293 = vpop.f32.mrf.mxu0
        %v294 = vadd.f32 0.0, %v293
        %v295 = vpop.f32.mrf.mxu0
        %v296 = vadd.f32 0.0, %v295
        %297 = vmatprep.mubr.f32.mxu0 0.0
        %v298 = vand.u32 %v168, 4294901760
        %v299 = vsub.f32 %v168, %v298
        %v300 = vand.u32 %v299, 4294901760
        %v301 = vsub.f32 %v299, %v300
        %v302 = vand.u32 %v301, 4294901760
        %303 = vmatmul.mubr.f32.gmra.mxu0 %v302
        %v304 = vpop.f32.mrf.mxu0
        %v305 = vadd.f32 0.0, %v304
        %v306 = vpop.f32.mrf.mxu0
        %v307 = vadd.f32 0.0, %v306
        %308 = vmatprep.mubr.f32.mxu0 0.0
        %v309 = vand.u32 %v171, 4294901760
        %v310 = vsub.f32 %v171, %v309
        %v311 = vand.u32 %v310, 4294901760
        %v312 = vsub.f32 %v310, %v311
        %v313 = vand.u32 %v312, 4294901760
        %314 = vmatmul.mubr.f32.gmra.mxu0 %v313
        %v315 = vpop.f32.mrf.mxu0
        %v316 = vadd.f32 0.0, %v315
        %v317 = vpop.f32.mrf.mxu0
        %v318 = vadd.f32 0.0, %v317
        %319 = vmatprep.mubr.f32.mxu0 0.0
        %v320 = vand.u32 %v174, 4294901760
        %v321 = vsub.f32 %v174, %v320
        %v322 = vand.u32 %v321, 4294901760
        %v323 = vsub.f32 %v321, %v322
        %v324 = vand.u32 %v323, 4294901760
        %325 = vmatmul.mubr.f32.gmra.mxu0 %v324
        %v326 = vpop.f32.mrf.mxu0
        %v327 = vadd.f32 0.0, %v326
        %v328 = vpop.f32.mrf.mxu0
        %v329 = vadd.f32 0.0, %v328
        %330 = vmatprep.mubr.f32.mxu0 0.0
        %v331 = vand.u32 %v177, 4294901760
        %v332 = vsub.f32 %v177, %v331
        %v333 = vand.u32 %v332, 4294901760
        %v334 = vsub.f32 %v332, %v333
        %v335 = vand.u32 %v334, 4294901760
        %336 = vmatmul.mubr.f32.gmra.mxu0 %v335
        %v337 = vpop.f32.mrf.mxu0
        %v338 = vadd.f32 0.0, %v337
        %v339 = vpop.f32.mrf.mxu0
        %v340 = vadd.f32 0.0, %v339
        %341 = vmatprep.mubr.f32.mxu0 0.0
        %v342 = vand.u32 %v180, 4294901760
        %v343 = vsub.f32 %v180, %v342
        %v344 = vand.u32 %v343, 4294901760
        %v345 = vsub.f32 %v343, %v344
        %v346 = vand.u32 %v345, 4294901760
        %347 = vmatmul.mubr.f32.gmra.mxu0 %v346
        %v348 = vpop.f32.mrf.mxu0
        %v349 = vadd.f32 0.0, %v348
        %v350 = vpop.f32.mrf.mxu0
        %v351 = vadd.f32 0.0, %v350
        %352 = vdwg.mxu0
        %353 = vmatprep.subr.mxu0 0.0
        %354 = vmatpush1.msra.mxu0 0.0
        %355 = vmatprep.subr.mxu0 0.0
        %356 = vmatpush1.msra.mxu0 0.0
        %357 = vmatprep.subr.mxu0 0.0
        %358 = vmatpush1.msra.mxu0 0.0
        %359 = vmatprep.subr.mxu0 0.0
        %360 = vmatpush1.msra.mxu0 0.0
        %361 = vmatprep.subr.mxu0 0.0
        %362 = vmatpush1.msra.mxu0 0.0
        %363 = vmatprep.subr.mxu0 0.0
        %364 = vmatpush1.msra.mxu0 0.0
        %365 = vmatprep.subr.mxu0 0.0
        %366 = vmatpush1.msra.mxu0 0.0
        %367 = vmatprep.subr.mxu0 0.0
        %368 = vmatpush1.msra.mxu0 0.0
        %369 = vmatprep.subr.mxu0 0.0
        %370 = vmatpush1.msra.mxu0 0.0
        %371 = vmatprep.subr.mxu0 0.0
        %372 = vmatpush1.msra.mxu0 0.0
        %373 = vmatprep.subr.mxu0 0.0
        %374 = vmatpush1.msra.mxu0 0.0
        %375 = vmatprep.subr.mxu0 0.0
        %376 = vmatpush1.msra.mxu0 0.0
        %377 = vmatprep.subr.mxu0 0.0
        %378 = vmatpush1.msra.mxu0 0.0
        %379 = vmatprep.subr.mxu0 0.0
        %380 = vmatpush1.msra.mxu0 0.0
        %381 = vmatprep.subr.mxu0 0.0
        %382 = vmatpush1.msra.mxu0 0.0
        %v383 = vand.u32 %v185, 4294901760
        %v384 = vsub.f32 %v185, %v383
        %v385 = vand.u32 %v384, 4294901760
        %v386 = vsub.f32 %v384, %v385
        %v387 = vand.u32 %v386, 4294901760
        %388 = vmatprep.subr.mxu0 %v387
        %v389 = vand.u32 %v183, 4294901760
        %v390 = vsub.f32 %v183, %v389
        %v391 = vand.u32 %v390, 4294901760
        %v392 = vsub.f32 %v390, %v391
        %v393 = vand.u32 %v392, 4294901760
        %394 = vmatpush1.msra.mxu0 %v393
        %395 = vmatprep.subr.mxu0 0.0
        %396 = vmatpush2.msra.mxu0 0.0
        %397 = vmatprep.subr.mxu0 0.0
        %398 = vmatpush2.msra.mxu0 0.0
        %399 = vmatprep.subr.mxu0 0.0
        %400 = vmatpush2.msra.mxu0 0.0
        %401 = vmatprep.subr.mxu0 0.0
        %402 = vmatpush2.msra.mxu0 0.0
        %403 = vmatprep.subr.mxu0 0.0
        %404 = vmatpush2.msra.mxu0 0.0
        %405 = vmatprep.subr.mxu0 0.0
        %406 = vmatpush2.msra.mxu0 0.0
        %407 = vmatprep.subr.mxu0 0.0
        %408 = vmatpush2.msra.mxu0 0.0
        %409 = vmatprep.subr.mxu0 0.0
        %410 = vmatpush2.msra.mxu0 0.0
        %411 = vmatprep.subr.mxu0 0.0
        %412 = vmatpush2.msra.mxu0 0.0
        %413 = vmatprep.subr.mxu0 0.0
        %414 = vmatpush2.msra.mxu0 0.0
        %415 = vmatprep.subr.mxu0 0.0
        %416 = vmatpush2.msra.mxu0 0.0
        %417 = vmatprep.subr.mxu0 0.0
        %418 = vmatpush2.msra.mxu0 0.0
        %419 = vmatprep.subr.mxu0 0.0
        %420 = vmatpush2.msra.mxu0 0.0
        %421 = vmatprep.subr.mxu0 0.0
        %422 = vmatpush2.msra.mxu0 0.0
        %423 = vmatprep.subr.mxu0 0.0
        %424 = vmatpush2.msra.mxu0 0.0
        %425 = vmatprep.subr.mxu0 0.0
        %426 = vmatpush2.msra.mxu0 0.0
        %427 = vmatprep.mubr.f32.mxu0 0.0
        %v428 = vand.u32 %v156, 4294901760
        %429 = vmatmul.mubr.f32.gmra.mxu0 %v428
        %v430 = vpop.f32.mrf.mxu0
        %v431 = vadd.f32 %v261, %v430
        %v432 = vpop.f32.mrf.mxu0
        %v433 = vadd.f32 %v263, %v432
        %434 = vmatprep.mubr.f32.mxu0 0.0
        %v435 = vand.u32 %v159, 4294901760
        %436 = vmatmul.mubr.f32.gmra.mxu0 %v435
        %v437 = vpop.f32.mrf.mxu0
        %v438 = vadd.f32 %v272, %v437
        %v439 = vpop.f32.mrf.mxu0
        %v440 = vadd.f32 %v274, %v439
        %441 = vmatprep.mubr.f32.mxu0 0.0
        %v442 = vand.u32 %v162, 4294901760
        %443 = vmatmul.mubr.f32.gmra.mxu0 %v442
        %v444 = vpop.f32.mrf.mxu0
        %v445 = vadd.f32 %v283, %v444
        %v446 = vpop.f32.mrf.mxu0
        %v447 = vadd.f32 %v285, %v446
        %448 = vmatprep.mubr.f32.mxu0 0.0
        %v449 = vand.u32 %v165, 4294901760
        %450 = vmatmul.mubr.f32.gmra.mxu0 %v449
        %v451 = vpop.f32.mrf.mxu0
        %v452 = vadd.f32 %v294, %v451
        %v453 = vpop.f32.mrf.mxu0
        %v454 = vadd.f32 %v296, %v453
        %455 = vmatprep.mubr.f32.mxu0 0.0
        %v456 = vand.u32 %v168, 4294901760
        %457 = vmatmul.mubr.f32.gmra.mxu0 %v456
        %v458 = vpop.f32.mrf.mxu0
        %v459 = vadd.f32 %v305, %v458
        %v460 = vpop.f32.mrf.mxu0
        %v461 = vadd.f32 %v307, %v460
        %462 = vmatprep.mubr.f32.mxu0 0.0
        %v463 = vand.u32 %v171, 4294901760
        %464 = vmatmul.mubr.f32.gmra.mxu0 %v463
        %v465 = vpop.f32.mrf.mxu0
        %v466 = vadd.f32 %v316, %v465
        %v467 = vpop.f32.mrf.mxu0
        %v468 = vadd.f32 %v318, %v467
        %469 = vmatprep.mubr.f32.mxu0 0.0
        %v470 = vand.u32 %v174, 4294901760
        %471 = vmatmul.mubr.f32.gmra.mxu0 %v470
        %v472 = vpop.f32.mrf.mxu0
        %v473 = vadd.f32 %v327, %v472
        %v474 = vpop.f32.mrf.mxu0
        %v475 = vadd.f32 %v329, %v474
        %476 = vmatprep.mubr.f32.mxu0 0.0
        %v477 = vand.u32 %v177, 4294901760
        %478 = vmatmul.mubr.f32.gmra.mxu0 %v477
        %v479 = vpop.f32.mrf.mxu0
        %v480 = vadd.f32 %v338, %v479
        %v481 = vpop.f32.mrf.mxu0
        %v482 = vadd.f32 %v340, %v481
        %483 = vmatprep.mubr.f32.mxu0 0.0
        %v484 = vand.u32 %v180, 4294901760
        %485 = vmatmul.mubr.f32.gmra.mxu0 %v484
        %v486 = vpop.f32.mrf.mxu0
        %v487 = vadd.f32 %v349, %v486
        %v488 = vpop.f32.mrf.mxu0
        %v489 = vadd.f32 %v351, %v488
        %490 = vdwg.mxu0
        %491 = vmatprep.subr.mxu0 0.0
        %492 = vmatpush1.msra.mxu0 0.0
        %493 = vmatprep.subr.mxu0 0.0
        %494 = vmatpush1.msra.mxu0 0.0
        %495 = vmatprep.subr.mxu0 0.0
        %496 = vmatpush1.msra.mxu0 0.0
        %497 = vmatprep.subr.mxu0 0.0
        %498 = vmatpush1.msra.mxu0 0.0
        %499 = vmatprep.subr.mxu0 0.0
        %500 = vmatpush1.msra.mxu0 0.0
        %501 = vmatprep.subr.mxu0 0.0
        %502 = vmatpush1.msra.mxu0 0.0
        %503 = vmatprep.subr.mxu0 0.0
        %504 = vmatpush1.msra.mxu0 0.0
        %505 = vmatprep.subr.mxu0 0.0
        %506 = vmatpush1.msra.mxu0 0.0
        %507 = vmatprep.subr.mxu0 0.0
        %508 = vmatpush1.msra.mxu0 0.0
        %509 = vmatprep.subr.mxu0 0.0
        %510 = vmatpush1.msra.mxu0 0.0
        %511 = vmatprep.subr.mxu0 0.0
        %512 = vmatpush1.msra.mxu0 0.0
        %513 = vmatprep.subr.mxu0 0.0
        %514 = vmatpush1.msra.mxu0 0.0
        %515 = vmatprep.subr.mxu0 0.0
        %516 = vmatpush1.msra.mxu0 0.0
        %517 = vmatprep.subr.mxu0 0.0
        %518 = vmatpush1.msra.mxu0 0.0
        %519 = vmatprep.subr.mxu0 0.0
        %520 = vmatpush1.msra.mxu0 0.0
        %v521 = vand.u32 %v185, 4294901760
        %v522 = vsub.f32 %v185, %v521
        %523 = vmatprep.subr.mxu0 %v522
        %v524 = vand.u32 %v183, 4294901760
        %v525 = vsub.f32 %v183, %v524
        %526 = vmatpush1.msra.mxu0 %v525
        %527 = vmatprep.subr.mxu0 0.0
        %528 = vmatpush2.msra.mxu0 0.0
        %529 = vmatprep.subr.mxu0 0.0
        %530 = vmatpush2.msra.mxu0 0.0
        %531 = vmatprep.subr.mxu0 0.0
        %532 = vmatpush2.msra.mxu0 0.0
        %533 = vmatprep.subr.mxu0 0.0
        %534 = vmatpush2.msra.mxu0 0.0
        %535 = vmatprep.subr.mxu0 0.0
        %536 = vmatpush2.msra.mxu0 0.0
        %537 = vmatprep.subr.mxu0 0.0
        %538 = vmatpush2.msra.mxu0 0.0
        %539 = vmatprep.subr.mxu0 0.0
        %540 = vmatpush2.msra.mxu0 0.0
        %541 = vmatprep.subr.mxu0 0.0
        %542 = vmatpush2.msra.mxu0 0.0
        %543 = vmatprep.subr.mxu0 0.0
        %544 = vmatpush2.msra.mxu0 0.0
        %545 = vmatprep.subr.mxu0 0.0
        %546 = vmatpush2.msra.mxu0 0.0
        %547 = vmatprep.subr.mxu0 0.0
        %548 = vmatpush2.msra.mxu0 0.0
        %549 = vmatprep.subr.mxu0 0.0
        %550 = vmatpush2.msra.mxu0 0.0
        %551 = vmatprep.subr.mxu0 0.0
        %552 = vmatpush2.msra.mxu0 0.0
        %553 = vmatprep.subr.mxu0 0.0
        %554 = vmatpush2.msra.mxu0 0.0
        %555 = vmatprep.subr.mxu0 0.0
        %556 = vmatpush2.msra.mxu0 0.0
        %557 = vmatprep.subr.mxu0 0.0
        %558 = vmatpush2.msra.mxu0 0.0
        %559 = vmatprep.mubr.f32.mxu0 0.0
        %v560 = vand.u32 %v156, 4294901760
        %v561 = vsub.f32 %v156, %v560
        %562 = vmatmul.mubr.f32.gmra.mxu0 %v561
        %v563 = vpop.f32.mrf.mxu0
        %v564 = vadd.f32 %v431, %v563
        %v565 = vpop.f32.mrf.mxu0
        %v566 = vadd.f32 %v433, %v565
        %567 = vmatprep.mubr.f32.mxu0 0.0
        %v568 = vand.u32 %v159, 4294901760
        %v569 = vsub.f32 %v159, %v568
        %570 = vmatmul.mubr.f32.gmra.mxu0 %v569
        %v571 = vpop.f32.mrf.mxu0
        %v572 = vadd.f32 %v438, %v571
        %v573 = vpop.f32.mrf.mxu0
        %v574 = vadd.f32 %v440, %v573
        %575 = vmatprep.mubr.f32.mxu0 0.0
        %v576 = vand.u32 %v162, 4294901760
        %v577 = vsub.f32 %v162, %v576
        %578 = vmatmul.mubr.f32.gmra.mxu0 %v577
        %v579 = vpop.f32.mrf.mxu0
        %v580 = vadd.f32 %v445, %v579
        %v581 = vpop.f32.mrf.mxu0
        %v582 = vadd.f32 %v447, %v581
        %583 = vmatprep.mubr.f32.mxu0 0.0
        %v584 = vand.u32 %v165, 4294901760
        %v585 = vsub.f32 %v165, %v584
        %586 = vmatmul.mubr.f32.gmra.mxu0 %v585
        %v587 = vpop.f32.mrf.mxu0
        %v588 = vadd.f32 %v452, %v587
        %v589 = vpop.f32.mrf.mxu0
        %v590 = vadd.f32 %v454, %v589
        %591 = vmatprep.mubr.f32.mxu0 0.0
        %v592 = vand.u32 %v168, 4294901760
        %v593 = vsub.f32 %v168, %v592
        %594 = vmatmul.mubr.f32.gmra.mxu0 %v593
        %v595 = vpop.f32.mrf.mxu0
        %v596 = vadd.f32 %v459, %v595
        %v597 = vpop.f32.mrf.mxu0
        %v598 = vadd.f32 %v461, %v597
        %599 = vmatprep.mubr.f32.mxu0 0.0
        %v600 = vand.u32 %v171, 4294901760
        %v601 = vsub.f32 %v171, %v600
        %602 = vmatmul.mubr.f32.gmra.mxu0 %v601
        %v603 = vpop.f32.mrf.mxu0
        %v604 = vadd.f32 %v466, %v603
        %v605 = vpop.f32.mrf.mxu0
        %v606 = vadd.f32 %v468, %v605
        %607 = vmatprep.mubr.f32.mxu0 0.0
        %v608 = vand.u32 %v174, 4294901760
        %v609 = vsub.f32 %v174, %v608
        %610 = vmatmul.mubr.f32.gmra.mxu0 %v609
        %v611 = vpop.f32.mrf.mxu0
        %v612 = vadd.f32 %v473, %v611
        %v613 = vpop.f32.mrf.mxu0
        %v614 = vadd.f32 %v475, %v613
        %615 = vmatprep.mubr.f32.mxu0 0.0
        %v616 = vand.u32 %v177, 4294901760
        %v617 = vsub.f32 %v177, %v616
        %618 = vmatmul.mubr.f32.gmra.mxu0 %v617
        %v619 = vpop.f32.mrf.mxu0
        %v620 = vadd.f32 %v480, %v619
        %v621 = vpop.f32.mrf.mxu0
        %v622 = vadd.f32 %v482, %v621
        %623 = vmatprep.mubr.f32.mxu0 0.0
        %v624 = vand.u32 %v180, 4294901760
        %v625 = vsub.f32 %v180, %v624
        %626 = vmatmul.mubr.f32.gmra.mxu0 %v625
        %v627 = vpop.f32.mrf.mxu0
        %v628 = vadd.f32 %v487, %v627
        %v629 = vpop.f32.mrf.mxu0
        %v630 = vadd.f32 %v489, %v629
        %631 = vdwg.mxu0
        %632 = vmatprep.subr.mxu0 0.0
        %633 = vmatpush1.msra.mxu0 0.0
        %634 = vmatprep.subr.mxu0 0.0
        %635 = vmatpush1.msra.mxu0 0.0
        %636 = vmatprep.subr.mxu0 0.0
        %637 = vmatpush1.msra.mxu0 0.0
        %638 = vmatprep.subr.mxu0 0.0
        %639 = vmatpush1.msra.mxu0 0.0
        %640 = vmatprep.subr.mxu0 0.0
        %641 = vmatpush1.msra.mxu0 0.0
        %642 = vmatprep.subr.mxu0 0.0
        %643 = vmatpush1.msra.mxu0 0.0
        %644 = vmatprep.subr.mxu0 0.0
        %645 = vmatpush1.msra.mxu0 0.0
        %646 = vmatprep.subr.mxu0 0.0
        %647 = vmatpush1.msra.mxu0 0.0
        %648 = vmatprep.subr.mxu0 0.0
        %649 = vmatpush1.msra.mxu0 0.0
        %650 = vmatprep.subr.mxu0 0.0
        %651 = vmatpush1.msra.mxu0 0.0
        %652 = vmatprep.subr.mxu0 0.0
        %653 = vmatpush1.msra.mxu0 0.0
        %654 = vmatprep.subr.mxu0 0.0
        %655 = vmatpush1.msra.mxu0 0.0
        %656 = vmatprep.subr.mxu0 0.0
        %657 = vmatpush1.msra.mxu0 0.0
        %658 = vmatprep.subr.mxu0 0.0
        %659 = vmatpush1.msra.mxu0 0.0
        %660 = vmatprep.subr.mxu0 0.0
        %661 = vmatpush1.msra.mxu0 0.0
        %v662 = vand.u32 %v185, 4294901760
        %663 = vmatprep.subr.mxu0 %v662
        %v664 = vand.u32 %v183, 4294901760
        %665 = vmatpush1.msra.mxu0 %v664
        %666 = vmatprep.subr.mxu0 0.0
        %667 = vmatpush2.msra.mxu0 0.0
        %668 = vmatprep.subr.mxu0 0.0
        %669 = vmatpush2.msra.mxu0 0.0
        %670 = vmatprep.subr.mxu0 0.0
        %671 = vmatpush2.msra.mxu0 0.0
        %672 = vmatprep.subr.mxu0 0.0
        %673 = vmatpush2.msra.mxu0 0.0
        %674 = vmatprep.subr.mxu0 0.0
        %675 = vmatpush2.msra.mxu0 0.0
        %676 = vmatprep.subr.mxu0 0.0
        %677 = vmatpush2.msra.mxu0 0.0
        %678 = vmatprep.subr.mxu0 0.0
        %679 = vmatpush2.msra.mxu0 0.0
        %680 = vmatprep.subr.mxu0 0.0
        %681 = vmatpush2.msra.mxu0 0.0
        %682 = vmatprep.subr.mxu0 0.0
        %683 = vmatpush2.msra.mxu0 0.0
        %684 = vmatprep.subr.mxu0 0.0
        %685 = vmatpush2.msra.mxu0 0.0
        %686 = vmatprep.subr.mxu0 0.0
        %687 = vmatpush2.msra.mxu0 0.0
        %688 = vmatprep.subr.mxu0 0.0
        %689 = vmatpush2.msra.mxu0 0.0
        %690 = vmatprep.subr.mxu0 0.0
        %691 = vmatpush2.msra.mxu0 0.0
        %692 = vmatprep.subr.mxu0 0.0
        %693 = vmatpush2.msra.mxu0 0.0
        %694 = vmatprep.subr.mxu0 0.0
        %695 = vmatpush2.msra.mxu0 0.0
        %696 = vmatprep.subr.mxu0 0.0
        %697 = vmatpush2.msra.mxu0 0.0
        %698 = vmatprep.mubr.f32.mxu0 0.0
        %v699 = vand.u32 %v156, 4294901760
        %v700 = vsub.f32 %v156, %v699
        %v701 = vand.u32 %v700, 4294901760
        %702 = vmatmul.mubr.f32.gmra.mxu0 %v701
        %v703 = vpop.f32.mrf.mxu0
        %v704 = vadd.f32 %v564, %v703
        %v705 = vpop.f32.mrf.mxu0
        %v706 = vadd.f32 %v566, %v705
        %707 = vmatprep.mubr.f32.mxu0 0.0
        %v708 = vand.u32 %v159, 4294901760
        %v709 = vsub.f32 %v159, %v708
        %v710 = vand.u32 %v709, 4294901760
        %711 = vmatmul.mubr.f32.gmra.mxu0 %v710
        %v712 = vpop.f32.mrf.mxu0
        %v713 = vadd.f32 %v572, %v712
        %v714 = vpop.f32.mrf.mxu0
        %v715 = vadd.f32 %v574, %v714
        %716 = vmatprep.mubr.f32.mxu0 0.0
        %v717 = vand.u32 %v162, 4294901760
        %v718 = vsub.f32 %v162, %v717
        %v719 = vand.u32 %v718, 4294901760
        %720 = vmatmul.mubr.f32.gmra.mxu0 %v719
        %v721 = vpop.f32.mrf.mxu0
        %v722 = vadd.f32 %v580, %v721
        %v723 = vpop.f32.mrf.mxu0
        %v724 = vadd.f32 %v582, %v723
        %725 = vmatprep.mubr.f32.mxu0 0.0
        %v726 = vand.u32 %v165, 4294901760
        %v727 = vsub.f32 %v165, %v726
        %v728 = vand.u32 %v727, 4294901760
        %729 = vmatmul.mubr.f32.gmra.mxu0 %v728
        %v730 = vpop.f32.mrf.mxu0
        %v731 = vadd.f32 %v588, %v730
        %v732 = vpop.f32.mrf.mxu0
        %v733 = vadd.f32 %v590, %v732
        %734 = vmatprep.mubr.f32.mxu0 0.0
        %v735 = vand.u32 %v168, 4294901760
        %v736 = vsub.f32 %v168, %v735
        %v737 = vand.u32 %v736, 4294901760
        %738 = vmatmul.mubr.f32.gmra.mxu0 %v737
        %v739 = vpop.f32.mrf.mxu0
        %v740 = vadd.f32 %v596, %v739
        %v741 = vpop.f32.mrf.mxu0
        %v742 = vadd.f32 %v598, %v741
        %743 = vmatprep.mubr.f32.mxu0 0.0
        %v744 = vand.u32 %v171, 4294901760
        %v745 = vsub.f32 %v171, %v744
        %v746 = vand.u32 %v745, 4294901760
        %747 = vmatmul.mubr.f32.gmra.mxu0 %v746
        %v748 = vpop.f32.mrf.mxu0
        %v749 = vadd.f32 %v604, %v748
        %v750 = vpop.f32.mrf.mxu0
        %v751 = vadd.f32 %v606, %v750
        %752 = vmatprep.mubr.f32.mxu0 0.0
        %v753 = vand.u32 %v174, 4294901760
        %v754 = vsub.f32 %v174, %v753
        %v755 = vand.u32 %v754, 4294901760
        %756 = vmatmul.mubr.f32.gmra.mxu0 %v755
        %v757 = vpop.f32.mrf.mxu0
        %v758 = vadd.f32 %v612, %v757
        %v759 = vpop.f32.mrf.mxu0
        %v760 = vadd.f32 %v614, %v759
        %761 = vmatprep.mubr.f32.mxu0 0.0
        %v762 = vand.u32 %v177, 4294901760
        %v763 = vsub.f32 %v177, %v762
        %v764 = vand.u32 %v763, 4294901760
        %765 = vmatmul.mubr.f32.gmra.mxu0 %v764
        %v766 = vpop.f32.mrf.mxu0
        %v767 = vadd.f32 %v620, %v766
        %v768 = vpop.f32.mrf.mxu0
        %v769 = vadd.f32 %v622, %v768
        %770 = vmatprep.mubr.f32.mxu0 0.0
        %v771 = vand.u32 %v180, 4294901760
        %v772 = vsub.f32 %v180, %v771
        %v773 = vand.u32 %v772, 4294901760
        %774 = vmatmul.mubr.f32.gmra.mxu0 %v773
        %v775 = vpop.f32.mrf.mxu0
        %v776 = vadd.f32 %v628, %v775
        %v777 = vpop.f32.mrf.mxu0
        %v778 = vadd.f32 %v630, %v777
        %779 = vdwg.mxu0
        %780 = vmatprep.subr.mxu0 0.0
        %781 = vmatpush1.msra.mxu0 0.0
        %782 = vmatprep.subr.mxu0 0.0
        %783 = vmatpush1.msra.mxu0 0.0
        %784 = vmatprep.subr.mxu0 0.0
        %785 = vmatpush1.msra.mxu0 0.0
        %786 = vmatprep.subr.mxu0 0.0
        %787 = vmatpush1.msra.mxu0 0.0
        %788 = vmatprep.subr.mxu0 0.0
        %789 = vmatpush1.msra.mxu0 0.0
        %790 = vmatprep.subr.mxu0 0.0
        %791 = vmatpush1.msra.mxu0 0.0
        %792 = vmatprep.subr.mxu0 0.0
        %793 = vmatpush1.msra.mxu0 0.0
        %794 = vmatprep.subr.mxu0 0.0
        %795 = vmatpush1.msra.mxu0 0.0
        %796 = vmatprep.subr.mxu0 0.0
        %797 = vmatpush1.msra.mxu0 0.0
        %798 = vmatprep.subr.mxu0 0.0
        %799 = vmatpush1.msra.mxu0 0.0
        %800 = vmatprep.subr.mxu0 0.0
        %801 = vmatpush1.msra.mxu0 0.0
        %802 = vmatprep.subr.mxu0 0.0
        %803 = vmatpush1.msra.mxu0 0.0
        %804 = vmatprep.subr.mxu0 0.0
        %805 = vmatpush1.msra.mxu0 0.0
        %806 = vmatprep.subr.mxu0 0.0
        %807 = vmatpush1.msra.mxu0 0.0
        %808 = vmatprep.subr.mxu0 0.0
        %809 = vmatpush1.msra.mxu0 0.0
        %v810 = vand.u32 %v185, 4294901760
        %v811 = vsub.f32 %v185, %v810
        %v812 = vand.u32 %v811, 4294901760
        %813 = vmatprep.subr.mxu0 %v812
        %v814 = vand.u32 %v183, 4294901760
        %v815 = vsub.f32 %v183, %v814
        %v816 = vand.u32 %v815, 4294901760
        %817 = vmatpush1.msra.mxu0 %v816
        %818 = vmatprep.subr.mxu0 0.0
        %819 = vmatpush2.msra.mxu0 0.0
        %820 = vmatprep.subr.mxu0 0.0
        %821 = vmatpush2.msra.mxu0 0.0
        %822 = vmatprep.subr.mxu0 0.0
        %823 = vmatpush2.msra.mxu0 0.0
        %824 = vmatprep.subr.mxu0 0.0
        %825 = vmatpush2.msra.mxu0 0.0
        %826 = vmatprep.subr.mxu0 0.0
        %827 = vmatpush2.msra.mxu0 0.0
        %828 = vmatprep.subr.mxu0 0.0
        %829 = vmatpush2.msra.mxu0 0.0
        %830 = vmatprep.subr.mxu0 0.0
        %831 = vmatpush2.msra.mxu0 0.0
        %832 = vmatprep.subr.mxu0 0.0
        %833 = vmatpush2.msra.mxu0 0.0
        %834 = vmatprep.subr.mxu0 0.0
        %835 = vmatpush2.msra.mxu0 0.0
        %836 = vmatprep.subr.mxu0 0.0
        %837 = vmatpush2.msra.mxu0 0.0
        %838 = vmatprep.subr.mxu0 0.0
        %839 = vmatpush2.msra.mxu0 0.0
        %840 = vmatprep.subr.mxu0 0.0
        %841 = vmatpush2.msra.mxu0 0.0
        %842 = vmatprep.subr.mxu0 0.0
        %843 = vmatpush2.msra.mxu0 0.0
        %844 = vmatprep.subr.mxu0 0.0
        %845 = vmatpush2.msra.mxu0 0.0
        %846 = vmatprep.subr.mxu0 0.0
        %847 = vmatpush2.msra.mxu0 0.0
        %848 = vmatprep.subr.mxu0 0.0
        %849 = vmatpush2.msra.mxu0 0.0
        %850 = vmatprep.mubr.f32.mxu0 0.0
        %v851 = vand.u32 %v156, 4294901760
        %852 = vmatmul.mubr.f32.gmra.mxu0 %v851
        %v853 = vpop.f32.mrf.mxu0
        %v854 = vadd.f32 %v704, %v853
        %v855 = vpop.f32.mrf.mxu0
        %v856 = vadd.f32 %v706, %v855
        %857 = vmatprep.mubr.f32.mxu0 0.0
        %v858 = vand.u32 %v159, 4294901760
        %859 = vmatmul.mubr.f32.gmra.mxu0 %v858
        %v860 = vpop.f32.mrf.mxu0
        %v861 = vadd.f32 %v713, %v860
        %v862 = vpop.f32.mrf.mxu0
        %v863 = vadd.f32 %v715, %v862
        %864 = vmatprep.mubr.f32.mxu0 0.0
        %v865 = vand.u32 %v162, 4294901760
        %866 = vmatmul.mubr.f32.gmra.mxu0 %v865
        %v867 = vpop.f32.mrf.mxu0
        %v868 = vadd.f32 %v722, %v867
        %v869 = vpop.f32.mrf.mxu0
        %v870 = vadd.f32 %v724, %v869
        %871 = vmatprep.mubr.f32.mxu0 0.0
        %v872 = vand.u32 %v165, 4294901760
        %873 = vmatmul.mubr.f32.gmra.mxu0 %v872
        %v874 = vpop.f32.mrf.mxu0
        %v875 = vadd.f32 %v731, %v874
        %v876 = vpop.f32.mrf.mxu0
        %v877 = vadd.f32 %v733, %v876
        %878 = vmatprep.mubr.f32.mxu0 0.0
        %v879 = vand.u32 %v168, 4294901760
        %880 = vmatmul.mubr.f32.gmra.mxu0 %v879
        %v881 = vpop.f32.mrf.mxu0
        %v882 = vadd.f32 %v740, %v881
        %v883 = vpop.f32.mrf.mxu0
        %v884 = vadd.f32 %v742, %v883
        %885 = vmatprep.mubr.f32.mxu0 0.0
        %v886 = vand.u32 %v171, 4294901760
        %887 = vmatmul.mubr.f32.gmra.mxu0 %v886
        %v888 = vpop.f32.mrf.mxu0
        %v889 = vadd.f32 %v749, %v888
        %v890 = vpop.f32.mrf.mxu0
        %v891 = vadd.f32 %v751, %v890
        %892 = vmatprep.mubr.f32.mxu0 0.0
        %v893 = vand.u32 %v174, 4294901760
        %894 = vmatmul.mubr.f32.gmra.mxu0 %v893
        %v895 = vpop.f32.mrf.mxu0
        %v896 = vadd.f32 %v758, %v895
        %v897 = vpop.f32.mrf.mxu0
        %v898 = vadd.f32 %v760, %v897
        %899 = vmatprep.mubr.f32.mxu0 0.0
        %v900 = vand.u32 %v177, 4294901760
        %901 = vmatmul.mubr.f32.gmra.mxu0 %v900
        %v902 = vpop.f32.mrf.mxu0
        %v903 = vadd.f32 %v767, %v902
        %v904 = vpop.f32.mrf.mxu0
        %v905 = vadd.f32 %v769, %v904
        %906 = vmatprep.mubr.f32.mxu0 0.0
        %v907 = vand.u32 %v180, 4294901760
        %908 = vmatmul.mubr.f32.gmra.mxu0 %v907
        %v909 = vpop.f32.mrf.mxu0
        %v910 = vadd.f32 %v776, %v909
        %v911 = vpop.f32.mrf.mxu0
        %v912 = vadd.f32 %v778, %v911
        %913 = vdwg.mxu0
        %914 = vmatprep.subr.mxu0 0.0
        %915 = vmatpush1.msra.mxu0 0.0
        %916 = vmatprep.subr.mxu0 0.0
        %917 = vmatpush1.msra.mxu0 0.0
        %918 = vmatprep.subr.mxu0 0.0
        %919 = vmatpush1.msra.mxu0 0.0
        %920 = vmatprep.subr.mxu0 0.0
        %921 = vmatpush1.msra.mxu0 0.0
        %922 = vmatprep.subr.mxu0 0.0
        %923 = vmatpush1.msra.mxu0 0.0
        %924 = vmatprep.subr.mxu0 0.0
        %925 = vmatpush1.msra.mxu0 0.0
        %926 = vmatprep.subr.mxu0 0.0
        %927 = vmatpush1.msra.mxu0 0.0
        %928 = vmatprep.subr.mxu0 0.0
        %929 = vmatpush1.msra.mxu0 0.0
        %930 = vmatprep.subr.mxu0 0.0
        %931 = vmatpush1.msra.mxu0 0.0
        %932 = vmatprep.subr.mxu0 0.0
        %933 = vmatpush1.msra.mxu0 0.0
        %934 = vmatprep.subr.mxu0 0.0
        %935 = vmatpush1.msra.mxu0 0.0
        %936 = vmatprep.subr.mxu0 0.0
        %937 = vmatpush1.msra.mxu0 0.0
        %938 = vmatprep.subr.mxu0 0.0
        %939 = vmatpush1.msra.mxu0 0.0
        %940 = vmatprep.subr.mxu0 0.0
        %941 = vmatpush1.msra.mxu0 0.0
        %942 = vmatprep.subr.mxu0 0.0
        %943 = vmatpush1.msra.mxu0 0.0
        %v944 = vand.u32 %v185, 4294901760
        %945 = vmatprep.subr.mxu0 %v944
        %v946 = vand.u32 %v183, 4294901760
        %947 = vmatpush1.msra.mxu0 %v946
        %948 = vmatprep.subr.mxu0 0.0
        %949 = vmatpush2.msra.mxu0 0.0
        %950 = vmatprep.subr.mxu0 0.0
        %951 = vmatpush2.msra.mxu0 0.0
        %952 = vmatprep.subr.mxu0 0.0
        %953 = vmatpush2.msra.mxu0 0.0
        %954 = vmatprep.subr.mxu0 0.0
        %955 = vmatpush2.msra.mxu0 0.0
        %956 = vmatprep.subr.mxu0 0.0
        %957 = vmatpush2.msra.mxu0 0.0
        %958 = vmatprep.subr.mxu0 0.0
        %959 = vmatpush2.msra.mxu0 0.0
        %960 = vmatprep.subr.mxu0 0.0
        %961 = vmatpush2.msra.mxu0 0.0
        %962 = vmatprep.subr.mxu0 0.0
        %963 = vmatpush2.msra.mxu0 0.0
        %964 = vmatprep.subr.mxu0 0.0
        %965 = vmatpush2.msra.mxu0 0.0
        %966 = vmatprep.subr.mxu0 0.0
        %967 = vmatpush2.msra.mxu0 0.0
        %968 = vmatprep.subr.mxu0 0.0
        %969 = vmatpush2.msra.mxu0 0.0
        %970 = vmatprep.subr.mxu0 0.0
        %971 = vmatpush2.msra.mxu0 0.0
        %972 = vmatprep.subr.mxu0 0.0
        %973 = vmatpush2.msra.mxu0 0.0
        %974 = vmatprep.subr.mxu0 0.0
        %975 = vmatpush2.msra.mxu0 0.0
        %976 = vmatprep.subr.mxu0 0.0
        %977 = vmatpush2.msra.mxu0 0.0
        %978 = vmatprep.subr.mxu0 0.0
        %979 = vmatpush2.msra.mxu0 0.0
        %980 = vmatprep.mubr.f32.mxu0 0.0
        %v981 = vand.u32 %v156, 4294901760
        %982 = vmatmul.mubr.f32.gmra.mxu0 %v981
        %v983 = vpop.f32.mrf.mxu0
        %v984 = vadd.f32 %v854, %v983
        %v985 = vpop.f32.mrf.mxu0
        %v986 = vadd.f32 %v856, %v985
        %987 = vmatprep.mubr.f32.mxu0 0.0
        %v988 = vand.u32 %v159, 4294901760
        %989 = vmatmul.mubr.f32.gmra.mxu0 %v988
        %v990 = vpop.f32.mrf.mxu0
        %v991 = vadd.f32 %v861, %v990
        %v992 = vpop.f32.mrf.mxu0
        %v993 = vadd.f32 %v863, %v992
        %994 = vmatprep.mubr.f32.mxu0 0.0
        %v995 = vand.u32 %v162, 4294901760
        %996 = vmatmul.mubr.f32.gmra.mxu0 %v995
        %v997 = vpop.f32.mrf.mxu0
        %v998 = vadd.f32 %v868, %v997
        %v999 = vpop.f32.mrf.mxu0
        %v1000 = vadd.f32 %v870, %v999
        %1001 = vmatprep.mubr.f32.mxu0 0.0
        %v1002 = vand.u32 %v165, 4294901760
        %1003 = vmatmul.mubr.f32.gmra.mxu0 %v1002
        %v1004 = vpop.f32.mrf.mxu0
        %v1005 = vadd.f32 %v875, %v1004
        %v1006 = vpop.f32.mrf.mxu0
        %v1007 = vadd.f32 %v877, %v1006
        %1008 = vmatprep.mubr.f32.mxu0 0.0
        %v1009 = vand.u32 %v168, 4294901760
        %1010 = vmatmul.mubr.f32.gmra.mxu0 %v1009
        %v1011 = vpop.f32.mrf.mxu0
        %v1012 = vadd.f32 %v882, %v1011
        %v1013 = vpop.f32.mrf.mxu0
        %v1014 = vadd.f32 %v884, %v1013
        %1015 = vmatprep.mubr.f32.mxu0 0.0
        %v1016 = vand.u32 %v171, 4294901760
        %1017 = vmatmul.mubr.f32.gmra.mxu0 %v1016
        %v1018 = vpop.f32.mrf.mxu0
        %v1019 = vadd.f32 %v889, %v1018
        %v1020 = vpop.f32.mrf.mxu0
        %v1021 = vadd.f32 %v891, %v1020
        %1022 = vmatprep.mubr.f32.mxu0 0.0
        %v1023 = vand.u32 %v174, 4294901760
        %1024 = vmatmul.mubr.f32.gmra.mxu0 %v1023
        %v1025 = vpop.f32.mrf.mxu0
        %v1026 = vadd.f32 %v896, %v1025
        %v1027 = vpop.f32.mrf.mxu0
        %v1028 = vadd.f32 %v898, %v1027
        %1029 = vmatprep.mubr.f32.mxu0 0.0
        %v1030 = vand.u32 %v177, 4294901760
        %1031 = vmatmul.mubr.f32.gmra.mxu0 %v1030
        %v1032 = vpop.f32.mrf.mxu0
        %v1033 = vadd.f32 %v903, %v1032
        %v1034 = vpop.f32.mrf.mxu0
        %v1035 = vadd.f32 %v905, %v1034
        %1036 = vmatprep.mubr.f32.mxu0 0.0
        %v1037 = vand.u32 %v180, 4294901760
        %1038 = vmatmul.mubr.f32.gmra.mxu0 %v1037
        %v1039 = vpop.f32.mrf.mxu0
        %v1040 = vadd.f32 %v910, %v1039
        %v1041 = vpop.f32.mrf.mxu0
        %v1042 = vadd.f32 %v912, %v1041
        %1043 = vdwg.mxu0
        %vm1044 = vcmask 1040384
        %v1045 = vsel %vm1044, %v1040, -inf
        %v1046 = vsel %vm1044, %v1042, -inf
        %v1047 = vmax.f32 %v1045, %v1046
        %1048 = vmax.xlane.f32.xlu0 %v1047
        %v1049 = vpop.xlane.xlu0 %1048
        %v1050 = vsub.f32 %v1040, %v1049
        %v1051 = vsub.f32 %v1042, %v1049
        %v1052 = vmul.f32 %v1050, 1.442695
        %v1053 = vpow.pop %v1052
        %v1054 = vmul.f32 %v1051, 1.442695
        %v1055 = vpow.pop %v1054
        %v1056 = vsel %vm1044, %v1053, 0.0
        %v1057 = vsel %vm1044, %v1055, 0.0
        %v1058 = vadd.f32 %v1056, %v1057
        %1059 = vadd.xlane.f32.xlu0 %v1058
        %v1060 = vpop.xlane.xlu0 %1059
        %v1061 = vlaneseq
        %v1062 = vshrl.u32 %v1061, 7
        %v1063 = vsub.s32 0, %v1062
        %v1064 = vrot.slane %v1053, %v1063
        %v1065 = vlaneseq
        %v1066 = vshrl.u32 %v1065, 7
        %v1067 = vsub.s32 0, %v1066
        %v1068 = vrot.slane %v1055, %v1067
        %v1069 = vmul.f32 %v984, %v1064
        %v1070 = vmul.f32 %v986, %v1068
        %v1071 = vmul.f32 %v991, %v1064
        %v1072 = vmul.f32 %v993, %v1068
        %v1073 = vmul.f32 %v998, %v1064
        %v1074 = vmul.f32 %v1000, %v1068
        %v1075 = vmul.f32 %v1005, %v1064
        %v1076 = vmul.f32 %v1007, %v1068
        %v1077 = vadd.f32 %v1069, %v1070
        %1078 = vadd.xlane.f32.xlu0 %v1077
        %v1079 = vpop.xlane.xlu0 %1078
        %v1080 = vadd.f32 %v1071, %v1072
        %1081 = vadd.xlane.f32.xlu0 %v1080
        %v1082 = vpop.xlane.xlu0 %1081
        %v1083 = vadd.f32 %v1073, %v1074
        %1084 = vadd.xlane.f32.xlu0 %v1083
        %v1085 = vpop.xlane.xlu0 %1084
        %v1086 = vadd.f32 %v1075, %v1076
        %1087 = vadd.xlane.f32.xlu0 %v1086
        %v1088 = vpop.xlane.xlu0 %1087
        %v1089 = vrcp.pop %v1060
        %v1090 = vlaneseq
        %v1091 = vshrl.u32 %v1090, 7
        %v1092 = vsub.s32 0, %v1091
        %v1093 = vrot.slane %v1089, %v1092
        %v1094 = vmul.f32 %v1079, %v1093
        %v1095 = vmul.f32 %v1082, %v1093
        %v1096 = vmul.f32 %v1085, %v1093
        %v1097 = vmul.f32 %v1088, %v1093
        %v1098 = vmax.f32 %v1012, 0.0
        %v1099 = vmax.f32 %v1014, 0.0
        %v1100 = vmax.f32 %v1019, 0.0
        %v1101 = vmax.f32 %v1021, 0.0
        %v1102 = vmax.f32 %v1026, 0.0
        %v1103 = vmax.f32 %v1028, 0.0
        %v1104 = vmax.f32 %v1033, 0.0
        %v1105 = vmax.f32 %v1035, 0.0
        %v1106 = vmul.f32 %v1098, %v1094
        %v1107 = vmul.f32 %v1099, %v1094
        %v1108 = vmul.f32 %v1100, %v1095
        %v1109 = vmul.f32 %v1101, %v1095
        %v1110 = vmul.f32 %v1102, %v1096
        %v1111 = vmul.f32 %v1103, %v1096
        %v1112 = vmul.f32 %v1104, %v1097
        %v1113 = vmul.f32 %v1105, %v1097
        %1114 = vst [vmem:[%s136] sm:$0xff] %v1106
        %1115 = vst [vmem:[%s136 + $0x8] sm:$0xff] %v1107
        %1116 = vst [vmem:[%s136 + $0x10] sm:$0xff] %v1108
        %1117 = vst [vmem:[%s136 + $0x18] sm:$0xff] %v1109
        %1118 = vst [vmem:[%s136 + $0x20] sm:$0xff] %v1110
        %1119 = vst [vmem:[%s136 + $0x28] sm:$0xff] %v1111
        %1120 = vst [vmem:[%s136 + $0x30] sm:$0xff] %v1112
        %1121 = vst [vmem:[%s136 + $0x38] sm:$0xff] %v1113
        %s1122 = sand.u32 %s71, 1
        %s1123 = scalar_lea.sflag [#allocation3], %s1122
        %s1124 = sand.u32 %s71, 1
        %s1125 = smul.addr %s1124, 64
        %s1126 = scalar_lea.vmem [#allocation2], %s1125
        // Predicated region
        $region29: #{tpu_custom_call.1} parent=27 // pred_check
          %p1127 = pneg %p81
        $region30: #{tpu_custom_call.1} parent=27 // pred_check_branch
          %1129 = sbr.rel (%p1127) target = $region32
        $region31: #{tpu_custom_call.1} parent=27 // pred_region
          %s1131 = ssub.s32 1024, 1024
          %1132 = vsyncadd %s1123, %s1131
          %s1133 = smul.addr %s16, 8
          %s1134 = smul.addr %s1133, 128
          %s1135 = scalar_lea.hbm %s2, %s1134
          %s1136 = sshll.u32 %s1126, 4
          %s1137 = int_to_ptr.vmem [resolvable:$true] %s1136
          %1142 = dma.vmem_to_hbm [thread:$0]  %s1137, 1024, %s1135, %s1123, 256, 256, 16
        $region32: #{tpu_custom_call.1} parent=27 // pred_fallthru
          _
      $region28: #{tpu_custom_call.1} parent=5 // pred_fallthru
        _
      %p1143 = scmp.le.s32.totalorder 2, %s11
      // Predicated region
      $region33: #{tpu_custom_call.1} parent=5 // pred_check
        %p1144 = pneg %p1143
      $region34: #{tpu_custom_call.1} parent=5 // pred_check_branch
        %1146 = sbr.rel (%p1144) target = $region36
      $region35: #{tpu_custom_call.1} parent=5 // pred_region
        %s1147 = ssub.s32 %s11, 2
        // Predicated region
        $region37: #{tpu_custom_call.1} parent=35 // pred_check
          %p1148 = pneg %p87
        $region38: #{tpu_custom_call.1} parent=35 // pred_check_branch
          %1150 = sbr.rel (%p1148) target = $region40
        $region39: #{tpu_custom_call.1} parent=35 // pred_region
          %s1151 = sand.u32 %s72, 1
          %s1152 = scalar_lea.sflag [#allocation3], %s1151
          %s1153 = sand.u32 %s72, 1
          %s1154 = smul.addr %s1153, 64
          %s1155 = scalar_lea.vmem [#allocation2], %s1154
          %1156 = dma.done %s1152, 1024
        $region40: #{tpu_custom_call.1} parent=35 // pred_fallthru
          _
      $region36: #{tpu_custom_call.1} parent=5 // pred_fallthru
        _
    $region6: #{tpu_custom_call.1} parent=1 // loop_footer
      %s15 = sadd.s32 1, %s11
    $region7: #{tpu_custom_call.1} parent=1 // loop_footer_branch
      %10 = sbr.rel target = $region3
    $region8: #{tpu_custom_call.1} parent=1 // loop_exit
      _
    %1157 = vsyncpa [#allocation3], 1
    %s1158 = scalar_lea.sflag [#allocation3], 1
    %1159 = vsyncpa %s1158, 1

</llo_original>
